<compile_context>
chip_gen: v5e
topology: v5e:2x2
jax: 0.10.0
libtpu: 0.0.40
codegen_flags: <defaults>
</compile_context>

<pallas_src>
import functools

import jax
import jax.numpy as jnp
from jax.experimental import pallas as pl
from jax.experimental.pallas import tpu as pltpu

# ----- model hyperparameters (small, lane-friendly) -----
VOCAB_SIZE = 128
CONTEXT_SIZE = 2
N_DIM = 64
HIDDEN = 128
FLAT = CONTEXT_SIZE * N_DIM  # 128


def ngram_kernel(idx_ref,   # VMEM (TB, CONTEXT_SIZE) int32
                 ef_ref,    # VMEM (CONTEXT_SIZE * VOCAB_SIZE, HIDDEN) f32 (folded emb@w1, resident)
                 b1_ref,    # VMEM (1, HIDDEN)
                 w2_ref,    # VMEM (HIDDEN, VOCAB_SIZE)               (resident)
                 b2_ref,    # VMEM (1, VOCAB_SIZE)
                 out_ref):  # VMEM (TB, VOCAB_SIZE)
    tb = out_ref.shape[0]

    idx = idx_ref[...]                                                # (TB, CONTEXT)
    lanes = jax.lax.broadcasted_iota(jnp.int32, (tb, VOCAB_SIZE), 1)  # lane-dense iota

    # linear1 fused with the embedding gather:
    #   h = sum_p onehot(idx[:, p]) @ E_p + b1
    # onehot rows for indices outside [0, VOCAB) are all-zero -> no OOB reads.
    acc = jnp.zeros((tb, HIDDEN), dtype=jnp.float32)
    for p in range(CONTEXT_SIZE):                                     # static unroll
        onehot = (idx[:, p:p + 1] == lanes).astype(jnp.float32)       # (TB, VOCAB)
        e_p = ef_ref[p * VOCAB_SIZE:(p + 1) * VOCAB_SIZE, :]          # (VOCAB, HIDDEN), static slice
        acc = acc + jnp.dot(onehot, e_p, preferred_element_type=jnp.float32)

    h = jnp.maximum(acc + b1_ref[...], 0.0)                           # (TB, HIDDEN)

    out = jnp.dot(h, w2_ref[...], preferred_element_type=jnp.float32) + b2_ref[...]
    out_ref[...] = out.astype(out_ref.dtype)


def ngram_forward(x_idx, emb, w1, b1, w2, b2, *, tile_b=256):
    """Batched forward.

    x_idx: (B, CONTEXT_SIZE) int32  ->  (B, VOCAB_SIZE) float32
    Each row is exactly the original module's forward applied to that context.
    """
    B = x_idx.shape[0]

    # Fold linear1 through the embedding (algebraically identical):
    #   E_p = emb @ w1[p*N_DIM:(p+1)*N_DIM, :]
    w1_pos = w1.reshape(CONTEXT_SIZE, N_DIM, HIDDEN)
    ef = jnp.einsum("vd,pdh->pvh", emb, w1_pos,
                    precision=jax.lax.Precision.HIGHEST)
    ef = ef.reshape(CONTEXT_SIZE * VOCAB_SIZE, HIDDEN)                # (2*VOCAB, HIDDEN)

    b1_2d = b1.reshape(1, HIDDEN)
    b2_2d = b2.reshape(1, VOCAB_SIZE)

    # Pad batch to a multiple of the tile; padded rows are sliced off at the end.
    bp = pl.cdiv(B, tile_b) * tile_b
    x_pad = x_idx if bp == B else jnp.pad(x_idx, ((0, bp - B), (0, 0)))
    grid = (bp // tile_b,)

    out = pl.pallas_call(
        ngram_kernel,
        out_shape=jax.ShapeDtypeStruct((bp, VOCAB_SIZE), jnp.float32),
        grid=grid,
        in_specs=[
            # Streamed per batch tile:
            pl.BlockSpec((tile_b, CONTEXT_SIZE), lambda b: (b, 0)),
            # Weights: constant block index -> resident in VMEM across the grid.
            pl.BlockSpec((CONTEXT_SIZE * VOCAB_SIZE, HIDDEN), lambda b: (0, 0)),
            pl.BlockSpec((1, HIDDEN), lambda b: (0, 0)),
            pl.BlockSpec((HIDDEN, VOCAB_SIZE), lambda b: (0, 0)),
            pl.BlockSpec((1, VOCAB_SIZE), lambda b: (0, 0)),
        ],
        out_specs=pl.BlockSpec((tile_b, VOCAB_SIZE), lambda b: (b, 0)),
        compiler_params=pltpu.CompilerParams(
            dimension_semantics=("parallel",)),  # v7x: split batch across 2 TCs
    )(x_pad, ef, b1_2d, w2, b2_2d)

    return out[:B]


def ngram_forward_single(x_idx_1d, emb, w1, b1, w2, b2):
    """Original module signature: x of shape (CONTEXT_SIZE,) -> (1, VOCAB_SIZE)."""
    return ngram_forward(x_idx_1d.reshape(1, CONTEXT_SIZE),
                         emb, w1, b1, w2, b2, tile_b=8)


def reference_forward_batch(x_idx, emb, w1, b1, w2, b2):
    e = emb[x_idx]                                   # (B, CONTEXT, N_DIM)
    flat = e.reshape(x_idx.shape[0], -1)             # (B, FLAT)
    h = jnp.maximum(
        jnp.dot(flat, w1, precision=jax.lax.Precision.HIGHEST) + b1, 0.0)
    return jnp.dot(h, w2, precision=jax.lax.Precision.HIGHEST) + b2


if __name__ == "__main__":
    key = jax.random.PRNGKey(0)
    k_emb, k_w1, k_b1, k_w2, k_b2, k_x = jax.random.split(key, 6)

    # Deterministic synthetic parameters (nn.Embedding ~ N(0,1); Linear ~ small uniform).
    emb = jax.random.normal(k_emb, (VOCAB_SIZE, N_DIM), dtype=jnp.float32)
    w1 = jax.random.uniform(k_w1, (FLAT, HIDDEN), jnp.float32, -0.1, 0.1)
    b1 = jax.random.uniform(k_b1, (HIDDEN,), jnp.float32, -0.1, 0.1)
    w2 = jax.random.uniform(k_w2, (HIDDEN, VOCAB_SIZE), jnp.float32, -0.1, 0.1)
    b2 = jax.random.uniform(k_b2, (VOCAB_SIZE,), jnp.float32, -0.1, 0.1)

    # Batched input: B contexts of CONTEXT_SIZE word indices each.
    B = 512
    x_idx = jax.random.randint(k_x, (B, CONTEXT_SIZE), 0, VOCAB_SIZE, dtype=jnp.int32)

    fwd = jax.jit(functools.partial(ngram_forward, tile_b=256))
    out = jax.block_until_ready(fwd(x_idx, emb, w1, b1, w2, b2))

    ref = reference_forward_batch(x_idx, emb, w1, b1, w2, b2)
    assert out.shape == (B, VOCAB_SIZE)
    assert jnp.allclose(out, ref, atol=1e-3, rtol=1e-3), "batched mismatch vs JAX reference"

    # Original single-context forward (x: (CONTEXT_SIZE,) -> (1, VOCAB_SIZE)).
    x_one = x_idx[0]
    out1 = jax.block_until_ready(ngram_forward_single(x_one, emb, w1, b1, w2, b2))
    ref1 = reference_forward_batch(x_one[None, :], emb, w1, b1, w2, b2)
    assert out1.shape == (1, VOCAB_SIZE)
    assert jnp.allclose(out1, ref1, atol=1e-3, rtol=1e-3), "single-context mismatch vs JAX reference"

    print("KERNEL_OK")
</pallas_src>

<mosaic_0001>
module attributes {stable_mosaic.version = 11 : i64} {
  func.func @ngram_kernel(%arg0: i32, %arg1: memref<256x2xi32, #tpu.memory_space<vmem>>, %arg2: memref<256x128xf32, #tpu.memory_space<vmem>>, %arg3: memref<1x128xf32, #tpu.memory_space<vmem>>, %arg4: memref<128x128xf32, #tpu.memory_space<vmem>>, %arg5: memref<1x128xf32, #tpu.memory_space<vmem>>, %arg6: memref<256x128xf32, #tpu.memory_space<vmem>>) attributes {dimension_semantics = [#tpu.dimension_semantics<parallel>], iteration_bounds = array<i64: 2>, scalar_prefetch = 0 : i64, scratch_operands = 0 : i64, tpu.core_type = #tpu.core_type<tc>, window_params = [{transform_indices = @transform_0, window_bounds = array<i64: 256, 2>}, {pipeline_mode = #tpu.pipeline_mode<synchronous>, transform_indices = @transform_1, window_bounds = array<i64: 256, 128>}, {pipeline_mode = #tpu.pipeline_mode<synchronous>, transform_indices = @transform_2, window_bounds = array<i64: 1, 128>}, {pipeline_mode = #tpu.pipeline_mode<synchronous>, transform_indices = @transform_3, window_bounds = array<i64: 128, 128>}, {pipeline_mode = #tpu.pipeline_mode<synchronous>, transform_indices = @transform_4, window_bounds = array<i64: 1, 128>}, {transform_indices = @transform_5, window_bounds = array<i64: 256, 128>}]} {
    %c0 = arith.constant 0 : index
    %c0_0 = arith.constant 0 : index
    %0 = vector.load %arg1[%c0, %c0_0] : memref<256x2xi32, #tpu.memory_space<vmem>>, vector<256x2xi32>
    %1 = tpu.iota {dimensions = array<i32: 1>} : vector<256x128xi32>
    %cst = arith.constant 0.000000e+00 : f32
    %2 = vector.broadcast %cst : f32 to vector<256x128xf32>
    %3 = vector.extract_strided_slice %0 {offsets = [0, 0], sizes = [256, 1], strides = [1, 1]} : vector<256x2xi32> to vector<256x1xi32>
    %4 = vector.broadcast %3 : vector<256x1xi32> to vector<256x128xi32>
    %5 = arith.cmpi eq, %4, %1 : vector<256x128xi32>
    %6 = arith.extui %5 : vector<256x128xi1> to vector<256x128xi32>
    %7 = arith.sitofp %6 : vector<256x128xi32> to vector<256x128xf32>
    %c0_1 = arith.constant 0 : index
    %c0_2 = arith.constant 0 : index
    %8 = vector.load %arg2[%c0_1, %c0_2] : memref<256x128xf32, #tpu.memory_space<vmem>>, vector<128x128xf32>
    %cst_3 = arith.constant dense<0.000000e+00> : vector<256x128xf32>
    %9 = tpu.matmul %7, %8, %cst_3 {dimension_numbers = #tpu.dot_dimension_numbers<[1], [0], [0], [1], [0, 0, 1, 1], [], []>} : vector<256x128xf32>, vector<128x128xf32>, vector<256x128xf32> -> vector<256x128xf32>
    %10 = arith.addf %2, %9 : vector<256x128xf32>
    %11 = vector.extract_strided_slice %0 {offsets = [0, 1], sizes = [256, 1], strides = [1, 1]} : vector<256x2xi32> to vector<256x1xi32>
    %12 = vector.broadcast %11 : vector<256x1xi32> to vector<256x128xi32>
    %13 = arith.cmpi eq, %12, %1 : vector<256x128xi32>
    %14 = arith.extui %13 : vector<256x128xi1> to vector<256x128xi32>
    %15 = arith.sitofp %14 : vector<256x128xi32> to vector<256x128xf32>
    %c128 = arith.constant 128 : index
    %c0_4 = arith.constant 0 : index
    %16 = vector.load %arg2[%c128, %c0_4] : memref<256x128xf32, #tpu.memory_space<vmem>>, vector<128x128xf32>
    %cst_5 = arith.constant dense<0.000000e+00> : vector<256x128xf32>
    %17 = tpu.matmul %15, %16, %cst_5 {dimension_numbers = #tpu.dot_dimension_numbers<[1], [0], [0], [1], [0, 0, 1, 1], [], []>} : vector<256x128xf32>, vector<128x128xf32>, vector<256x128xf32> -> vector<256x128xf32>
    %18 = arith.addf %10, %17 : vector<256x128xf32>
    %c0_6 = arith.constant 0 : index
    %c0_7 = arith.constant 0 : index
    %19 = vector.load %arg3[%c0_6, %c0_7] : memref<1x128xf32, #tpu.memory_space<vmem>>, vector<1x128xf32>
    %20 = vector.broadcast %19 : vector<1x128xf32> to vector<256x128xf32>
    %21 = arith.addf %18, %20 : vector<256x128xf32>
    %cst_8 = arith.constant 0.000000e+00 : f32
    %22 = vector.broadcast %cst_8 : f32 to vector<256x128xf32>
    %23 = arith.maximumf %21, %22 : vector<256x128xf32>
    %c0_9 = arith.constant 0 : index
    %c0_10 = arith.constant 0 : index
    %24 = vector.load %arg4[%c0_9, %c0_10] : memref<128x128xf32, #tpu.memory_space<vmem>>, vector<128x128xf32>
    %cst_11 = arith.constant dense<0.000000e+00> : vector<256x128xf32>
    %25 = tpu.matmul %23, %24, %cst_11 {dimension_numbers = #tpu.dot_dimension_numbers<[1], [0], [0], [1], [0, 0, 1, 1], [], []>} : vector<256x128xf32>, vector<128x128xf32>, vector<256x128xf32> -> vector<256x128xf32>
    %c0_12 = arith.constant 0 : index
    %c0_13 = arith.constant 0 : index
    %26 = vector.load %arg5[%c0_12, %c0_13] : memref<1x128xf32, #tpu.memory_space<vmem>>, vector<1x128xf32>
    %27 = vector.broadcast %26 : vector<1x128xf32> to vector<256x128xf32>
    %28 = arith.addf %25, %27 : vector<256x128xf32>
    %c0_14 = arith.constant 0 : index
    %c0_15 = arith.constant 0 : index
    %29 = vector.load %arg6[%c0_14, %c0_15] : memref<256x128xf32, #tpu.memory_space<vmem>>, vector<256x128xf32>
    tpu.vector_store %arg6[%c0_14, %c0_15], %28 {strides = array<i32>} : memref<256x128xf32, #tpu.memory_space<vmem>>, vector<256x128xf32>,
    return
  }
  func.func @transform_0(%arg0: i32) -> (i32, i32) {
    %c0_i32 = arith.constant 0 : i32
    %c0_i32_0 = arith.constant 0 : i32
    return %arg0, %c0_i32 : i32, i32
  }
  func.func @transform_1(%arg0: i32) -> (i32, i32) {
    %c0_i32 = arith.constant 0 : i32
    %c0_i32_0 = arith.constant 0 : i32
    %c0_i32_1 = arith.constant 0 : i32
    return %c0_i32, %c0_i32_0 : i32, i32
  }
  func.func @transform_2(%arg0: i32) -> (i32, i32) {
    %c0_i32 = arith.constant 0 : i32
    %c0_i32_0 = arith.constant 0 : i32
    %c0_i32_1 = arith.constant 0 : i32
    return %c0_i32, %c0_i32_0 : i32, i32
  }
  func.func @transform_3(%arg0: i32) -> (i32, i32) {
    %c0_i32 = arith.constant 0 : i32
    %c0_i32_0 = arith.constant 0 : i32
    %c0_i32_1 = arith.constant 0 : i32
    return %c0_i32, %c0_i32_0 : i32, i32
  }
  func.func @transform_4(%arg0: i32) -> (i32, i32) {
    %c0_i32 = arith.constant 0 : i32
    %c0_i32_0 = arith.constant 0 : i32
    %c0_i32_1 = arith.constant 0 : i32
    return %c0_i32, %c0_i32_0 : i32, i32
  }
  func.func @transform_5(%arg0: i32) -> (i32, i32) {
    %c0_i32 = arith.constant 0 : i32
    %c0_i32_0 = arith.constant 0 : i32
    return %arg0, %c0_i32 : i32, i32
  }
}

</mosaic_0001>

<llo_original>
// kernel: ngram_forward.1
$region0: #{ngram_forward.1}
  #allocation0 [shape = 'u32[]', space=smem, size = 0x4, offset = 0x4, fixed_abs, tag = 'smem constant byte address 0x4 - core index']
  #allocation1 [shape = 'u32[72,128]{1,0:T(1,128)}', space=vmem, size = 0x9000, scoped, tag = 'internal scratch']
  %s0 = inlined_call_operand.vmem [shape: s32[512,2], index: 0, kind: input, shape index: {}]
  %s1 = inlined_call_operand.vmem [shape: f32[256,128], index: 1, kind: input, shape index: {}]
  %s2 = inlined_call_operand.vmem [shape: f32[1,128], index: 2, kind: input, shape index: {}]
  %s3 = inlined_call_operand.vmem [shape: f32[128,128], index: 3, kind: input, shape index: {}]
  %s4 = inlined_call_operand.vmem [shape: f32[1,128], index: 4, kind: input, shape index: {}]
  %s5 = inlined_call_operand.hbm [shape: f32[512,128], index: 5, kind: output, shape index: {}]
  %s6 = sld [smem:[#allocation0]]
  $region53: #{ngram_forward.1} parent=0
    _
  %s8 = ssub.s32 1, %s6
  %s9 = scalar_select 0, %s8, %s6
  $region1: #{ngram_forward.1} parent=0
    #allocation2 [shape = 'u8[262144]{0}', space=vmem, size = 0x40000, scoped, tag = 'output window, operand 0']
    #allocation3 [shape = 's32[2]{0}', space=sflag, size = 0x8, scoped, tag = 'scoped memory for ngram_forward.1']
    %10 = vsyncpa [#allocation3], 0
    %s11 = scalar_lea.sflag [#allocation3], 1
    %12 = vsyncpa %s11, 0
    loop: start=0, step=1, limit=4
    $region2: #{ngram_forward.1} parent=1 // loop_pre_header
      _
    $region3: #{ngram_forward.1} parent=1 // loop_header
      %s14 = sphi 0, %s18
      %p15 = scmp.ge.s32.totalorder %s14, 4
      %s24 = sphi 0, %s26
      %s27 = sphi 0, %s24
      %s28 = sphi 0, %s27
      %s44 = sphi 0, %s28
      %s48 = sphi 0, %s48
      %s50 = sphi 0, %s48
      %s51 = sphi 0, %s50
      %s65 = sphi 0, %s51
      %s69 = sphi 0, %s69
      %s71 = sphi 0, %s69
      %s72 = sphi 0, %s71
      %s86 = sphi 0, %s72
      %s90 = sphi 0, %s90
      %s92 = sphi 0, %s90
      %s93 = sphi 0, %s92
      %s107 = sphi 0, %s93
      %s111 = sphi 0, %s111
      %s113 = sphi 0, %s111
      %s114 = sphi 0, %s113
      %s128 = sphi 0, %s114
      %s134 = sphi 0, %s136
      %s137 = sphi 0, %s134
      %s138 = sphi 0, %s137
      %s154 = sphi 0, %s138
    $region4: #{ngram_forward.1} parent=1 // loop_header_branch
      %17 = sbr.rel (%p15) target = $region8
    $region5: #{ngram_forward.1} parent=1 // loop_body
      %s19 = ssub.s32 %s14, 1
      %s20 = ssub.s32 %s14, 2
      %s21 = sadd.s32 %s14, 1
      %s22 = ssub.s32 %s14, %s21
      %p23 = scmp.eq.s32.totalorder %s22, 0
      %s25 = sadd.s32 %s24, 1
      %s26 = scalar_select %p23, %s24, %s25
      %p29 = pneg %p23
      %p30 = scmp.eq.s32.totalorder %s14, 1
      %p31 = por %p29, %p30
      %p32 = scmp.ne.s32.totalorder %s24, %s27
      %p33 = scmp.eq.s32.totalorder %s14, 0
      %p34 = por %p32, %p33
      %p35 = scmp.ne.s32.totalorder %s24, %s27
      %p36 = scmp.eq.s32.totalorder %s19, 1
      %p37 = por %p35, %p36
      %p38 = scmp.ne.s32.totalorder %s27, %s28
      %p39 = scmp.eq.s32.totalorder %s19, 0
      %p40 = por %p38, %p39
      %p41 = scmp.ne.s32.totalorder %s27, %s28
      %p42 = scmp.eq.s32.totalorder %s20, 1
      %p43 = por %p41, %p42
      %p45 = scmp.ne.s32.totalorder %s28, %s44
      %p46 = scmp.eq.s32.totalorder %s20, 0
      %p47 = por %p45, %p46
      %s49 = sadd.s32 %s48, 1
      %p52 = scmp.eq.s32.totalorder %s14, 1
      %p53 = scmp.ne.s32.totalorder %s48, %s50
      %p54 = scmp.eq.s32.totalorder %s14, 0
      %p55 = por %p53, %p54
      %p56 = scmp.ne.s32.totalorder %s48, %s50
      %p57 = scmp.eq.s32.totalorder %s19, 1
      %p58 = por %p56, %p57
      %p59 = scmp.ne.s32.totalorder %s50, %s51
      %p60 = scmp.eq.s32.totalorder %s19, 0
      %p61 = por %p59, %p60
      %p62 = scmp.ne.s32.totalorder %s50, %s51
      %p63 = scmp.eq.s32.totalorder %s20, 1
      %p64 = por %p62, %p63
      %p66 = scmp.ne.s32.totalorder %s51, %s65
      %p67 = scmp.eq.s32.totalorder %s20, 0
      %p68 = por %p66, %p67
      %s70 = sadd.s32 %s69, 1
      %p73 = scmp.eq.s32.totalorder %s14, 1
      %p74 = scmp.ne.s32.totalorder %s69, %s71
      %p75 = scmp.eq.s32.totalorder %s14, 0
      %p76 = por %p74, %p75
      %p77 = scmp.ne.s32.totalorder %s69, %s71
      %p78 = scmp.eq.s32.totalorder %s19, 1
      %p79 = por %p77, %p78
      %p80 = scmp.ne.s32.totalorder %s71, %s72
      %p81 = scmp.eq.s32.totalorder %s19, 0
      %p82 = por %p80, %p81
      %p83 = scmp.ne.s32.totalorder %s71, %s72
      %p84 = scmp.eq.s32.totalorder %s20, 1
      %p85 = por %p83, %p84
      %p87 = scmp.ne.s32.totalorder %s72, %s86
      %p88 = scmp.eq.s32.totalorder %s20, 0
      %p89 = por %p87, %p88
      %s91 = sadd.s32 %s90, 1
      %p94 = scmp.eq.s32.totalorder %s14, 1
      %p95 = scmp.ne.s32.totalorder %s90, %s92
      %p96 = scmp.eq.s32.totalorder %s14, 0
      %p97 = por %p95, %p96
      %p98 = scmp.ne.s32.totalorder %s90, %s92
      %p99 = scmp.eq.s32.totalorder %s19, 1
      %p100 = por %p98, %p99
      %p101 = scmp.ne.s32.totalorder %s92, %s93
      %p102 = scmp.eq.s32.totalorder %s19, 0
      %p103 = por %p101, %p102
      %p104 = scmp.ne.s32.totalorder %s92, %s93
      %p105 = scmp.eq.s32.totalorder %s20, 1
      %p106 = por %p104, %p105
      %p108 = scmp.ne.s32.totalorder %s93, %s107
      %p109 = scmp.eq.s32.totalorder %s20, 0
      %p110 = por %p108, %p109
      %s112 = sadd.s32 %s111, 1
      %p115 = scmp.eq.s32.totalorder %s14, 1
      %p116 = scmp.ne.s32.totalorder %s111, %s113
      %p117 = scmp.eq.s32.totalorder %s14, 0
      %p118 = por %p116, %p117
      %p119 = scmp.ne.s32.totalorder %s111, %s113
      %p120 = scmp.eq.s32.totalorder %s19, 1
      %p121 = por %p119, %p120
      %p122 = scmp.ne.s32.totalorder %s113, %s114
      %p123 = scmp.eq.s32.totalorder %s19, 0
      %p124 = por %p122, %p123
      %p125 = scmp.ne.s32.totalorder %s113, %s114
      %p126 = scmp.eq.s32.totalorder %s20, 1
      %p127 = por %p125, %p126
      %p129 = scmp.ne.s32.totalorder %s114, %s128
      %p130 = scmp.eq.s32.totalorder %s20, 0
      %p131 = por %p129, %p130
      %s132 = ssub.s32 %s14, %s21
      %p133 = scmp.eq.s32.totalorder %s132, 0
      %s135 = sadd.s32 %s134, 1
      %s136 = scalar_select %p133, %s134, %s135
      %p139 = pneg %p133
      %p140 = scmp.eq.s32.totalorder %s14, 1
      %p141 = por %p139, %p140
      %p142 = scmp.ne.s32.totalorder %s134, %s137
      %p143 = scmp.eq.s32.totalorder %s14, 0
      %p144 = por %p142, %p143
      %p145 = scmp.ne.s32.totalorder %s134, %s137
      %p146 = scmp.eq.s32.totalorder %s19, 1
      %p147 = por %p145, %p146
      %p148 = scmp.ne.s32.totalorder %s137, %s138
      %p149 = scmp.eq.s32.totalorder %s19, 0
      %p150 = por %p148, %p149
      %p151 = scmp.ne.s32.totalorder %s137, %s138
      %p152 = scmp.eq.s32.totalorder %s20, 1
      %p153 = por %p151, %p152
      %p155 = scmp.ne.s32.totalorder %s138, %s154
      %p156 = scmp.eq.s32.totalorder %s20, 0
      %p157 = por %p155, %p156
      %p158 = scmp.le.s32.totalorder 1, %s14
      %p159 = scmp.lt.s32.totalorder %s14, 3
      %p160 = pnand %p158, %p159
      %p161 = pneg %p160
      // Predicated region
      $region9: #{ngram_forward.1} parent=5 // pred_check
        _
      $region10: #{ngram_forward.1} parent=5 // pred_check_branch
        %163 = sbr.rel (%p160) target = $region12
      $region11: #{ngram_forward.1} parent=5 // pred_region
        %s164 = ssub.s32 %s14, 1
        // Predicated region
        $region13: #{ngram_forward.1} parent=11 // pred_check
          %p165 = pneg %p61
        $region14: #{ngram_forward.1} parent=11 // pred_check_branch
          %167 = sbr.rel (%p165) target = $region16
        $region15: #{ngram_forward.1} parent=11 // pred_region
          _
        $region16: #{ngram_forward.1} parent=11 // pred_fallthru
          _
        // Predicated region
        $region17: #{ngram_forward.1} parent=11 // pred_check
          %p168 = pneg %p82
        $region18: #{ngram_forward.1} parent=11 // pred_check_branch
          %170 = sbr.rel (%p168) target = $region20
        $region19: #{ngram_forward.1} parent=11 // pred_region
          _
        $region20: #{ngram_forward.1} parent=11 // pred_fallthru
          _
        // Predicated region
        $region21: #{ngram_forward.1} parent=11 // pred_check
          %p171 = pneg %p103
        $region22: #{ngram_forward.1} parent=11 // pred_check_branch
          %173 = sbr.rel (%p171) target = $region24
        $region23: #{ngram_forward.1} parent=11 // pred_region
          _
        $region24: #{ngram_forward.1} parent=11 // pred_fallthru
          _
        // Predicated region
        $region25: #{ngram_forward.1} parent=11 // pred_check
          %p174 = pneg %p124
        $region26: #{ngram_forward.1} parent=11 // pred_check_branch
          %176 = sbr.rel (%p174) target = $region28
        $region27: #{ngram_forward.1} parent=11 // pred_region
          _
        $region28: #{ngram_forward.1} parent=11 // pred_fallthru
          _
      $region12: #{ngram_forward.1} parent=5 // pred_fallthru
        _
      %p177 = scmp.lt.s32.totalorder %s14, 2
      // Predicated region
      $region29: #{ngram_forward.1} parent=5 // pred_check
        %p178 = pneg %p177
      $region30: #{ngram_forward.1} parent=5 // pred_check_branch
        %180 = sbr.rel (%p178) target = $region32
      $region31: #{ngram_forward.1} parent=5 // pred_region
        // Predicated region
        $region33: #{ngram_forward.1} parent=31 // pred_check
          %p181 = pneg %p34
        $region34: #{ngram_forward.1} parent=31 // pred_check_branch
          %183 = sbr.rel (%p181) target = $region36
        $region35: #{ngram_forward.1} parent=31 // pred_region
          %s184 = smul.u32 32, %s14
          %p185 = scmp.lt.s32.totalorder %s184, 63
          %s186 = scalar_select %p185, %s184, 63
          %s187 = smul.addr %s186, 8
          %s188 = scalar_lea.vmem %s0, %s187
          %s189 = smul.u32 32, %s14
        $region36: #{ngram_forward.1} parent=31 // pred_fallthru
          _
      $region32: #{ngram_forward.1} parent=5 // pred_fallthru
        _
      %p190 = scmp.le.s32.totalorder 1, %s14
      %p191 = scmp.lt.s32.totalorder %s14, 3
      %p192 = pnand %p190, %p191
      %p193 = pneg %p192
      // Predicated region
      $region37: #{ngram_forward.1} parent=5 // pred_check
        _
      $region38: #{ngram_forward.1} parent=5 // pred_check_branch
        %195 = sbr.rel (%p192) target = $region40
      $region39: #{ngram_forward.1} parent=5 // pred_region
        %s196 = ssub.s32 %s14, 1
        %s197 = smul.u32 32, %s19
        %p198 = scmp.lt.s32.totalorder %s197, 63
        %s199 = scalar_select %p198, %s197, 63
        %s200 = smul.addr %s199, 8
        %s201 = scalar_lea.vmem %s0, %s200
        %p202 = pneg %p40
        %p203 = pneg %p37
        %p204 = pneg %p61
        %p205 = pneg %p58
        %p206 = pneg %p82
        %p207 = pneg %p79
        %p208 = pneg %p103
        %p209 = pneg %p100
        %p210 = pneg %p124
        %p211 = pneg %p121
        %p212 = pneg %p150
        %p213 = pneg %p147
        %s214 = sand.u32 %s137, 1
        %s215 = scalar_lea.sflag [#allocation3], %s214
        %s216 = sand.u32 %s137, 1
        %s217 = smul.addr %s216, 256
        %s218 = scalar_lea.vmem [#allocation2], %s217
        %s219 = smul.u32 32, %s19
        %p220 = scmp.lt.s32.totalorder %s219, 63
        %s221 = scalar_select %p220, %s219, 63
        %s222 = smul.addr %s221, 8
        %s223 = scalar_lea.vmem %s0, %s222
        %s224 = smul.u32 32, %s19
        %s225 = smul.u32 32, %s19
        %v226 = vld [vmem:[%s223] sm:$0xff]
        %v227 = vld [vmem:[%s223 + $0x8] sm:$0xff]
        %v228 = vld [vmem:[%s223 + $0x10] sm:$0xff]
        %v229 = vld [vmem:[%s223 + $0x18] sm:$0xff]
        %v230 = vld [vmem:[%s223 + $0x20] sm:$0xff]
        %v231 = vld [vmem:[%s223 + $0x28] sm:$0xff]
        %v232 = vld [vmem:[%s223 + $0x30] sm:$0xff]
        %v233 = vld [vmem:[%s223 + $0x38] sm:$0xff]
        %v234 = vld [vmem:[%s223 + $0x40] sm:$0xff]
        %v235 = vld [vmem:[%s223 + $0x48] sm:$0xff]
        %v236 = vld [vmem:[%s223 + $0x50] sm:$0xff]
        %v237 = vld [vmem:[%s223 + $0x58] sm:$0xff]
        %v238 = vld [vmem:[%s223 + $0x60] sm:$0xff]
        %v239 = vld [vmem:[%s223 + $0x68] sm:$0xff]
        %v240 = vld [vmem:[%s223 + $0x70] sm:$0xff]
        %v241 = vld [vmem:[%s223 + $0x78] sm:$0xff]
        %v242 = vld [vmem:[%s223 + $0x80] sm:$0xff]
        %v243 = vld [vmem:[%s223 + $0x88] sm:$0xff]
        %v244 = vld [vmem:[%s223 + $0x90] sm:$0xff]
        %v245 = vld [vmem:[%s223 + $0x98] sm:$0xff]
        %v246 = vld [vmem:[%s223 + $0xa0] sm:$0xff]
        %v247 = vld [vmem:[%s223 + $0xa8] sm:$0xff]
        %v248 = vld [vmem:[%s223 + $0xb0] sm:$0xff]
        %v249 = vld [vmem:[%s223 + $0xb8] sm:$0xff]
        %v250 = vld [vmem:[%s223 + $0xc0] sm:$0xff]
        %v251 = vld [vmem:[%s223 + $0xc8] sm:$0xff]
        %v252 = vld [vmem:[%s223 + $0xd0] sm:$0xff]
        %v253 = vld [vmem:[%s223 + $0xd8] sm:$0xff]
        %v254 = vld [vmem:[%s223 + $0xe0] sm:$0xff]
        %v255 = vld [vmem:[%s223 + $0xe8] sm:$0xff]
        %v256 = vld [vmem:[%s223 + $0xf0] sm:$0xff]
        %v257 = vld [vmem:[%s223 + $0xf8] sm:$0xff]
        %v258 = vlaneseq
        %v259 = vand.u32 %v258, 127
        %260 = vset.pattern.permute.xlu0 0
        %261 = vperm.xlu0 %260, %v226
        %v262 = vpop.permute.xlu0 %261
        %263 = vset.pattern.permute.xlu0 0
        %264 = vperm.xlu0 %263, %v227
        %v265 = vpop.permute.xlu0 %264
        %266 = vset.pattern.permute.xlu0 0
        %267 = vperm.xlu0 %266, %v228
        %v268 = vpop.permute.xlu0 %267
        %269 = vset.pattern.permute.xlu0 0
        %270 = vperm.xlu0 %269, %v229
        %v271 = vpop.permute.xlu0 %270
        %272 = vset.pattern.permute.xlu0 0
        %273 = vperm.xlu0 %272, %v230
        %v274 = vpop.permute.xlu0 %273
        %275 = vset.pattern.permute.xlu0 0
        %276 = vperm.xlu0 %275, %v231
        %v277 = vpop.permute.xlu0 %276
        %278 = vset.pattern.permute.xlu0 0
        %279 = vperm.xlu0 %278, %v232
        %v280 = vpop.permute.xlu0 %279
        %281 = vset.pattern.permute.xlu0 0
        %282 = vperm.xlu0 %281, %v233
        %v283 = vpop.permute.xlu0 %282
        %284 = vset.pattern.permute.xlu0 0
        %285 = vperm.xlu0 %284, %v234
        %v286 = vpop.permute.xlu0 %285
        %287 = vset.pattern.permute.xlu0 0
        %288 = vperm.xlu0 %287, %v235
        %v289 = vpop.permute.xlu0 %288
        %290 = vset.pattern.permute.xlu0 0
        %291 = vperm.xlu0 %290, %v236
        %v292 = vpop.permute.xlu0 %291
        %293 = vset.pattern.permute.xlu0 0
        %294 = vperm.xlu0 %293, %v237
        %v295 = vpop.permute.xlu0 %294
        %296 = vset.pattern.permute.xlu0 0
        %297 = vperm.xlu0 %296, %v238
        %v298 = vpop.permute.xlu0 %297
        %299 = vset.pattern.permute.xlu0 0
        %300 = vperm.xlu0 %299, %v239
        %v301 = vpop.permute.xlu0 %300
        %302 = vset.pattern.permute.xlu0 0
        %303 = vperm.xlu0 %302, %v240
        %v304 = vpop.permute.xlu0 %303
        %305 = vset.pattern.permute.xlu0 0
        %306 = vperm.xlu0 %305, %v241
        %v307 = vpop.permute.xlu0 %306
        %308 = vset.pattern.permute.xlu0 0
        %309 = vperm.xlu0 %308, %v242
        %v310 = vpop.permute.xlu0 %309
        %311 = vset.pattern.permute.xlu0 0
        %312 = vperm.xlu0 %311, %v243
        %v313 = vpop.permute.xlu0 %312
        %314 = vset.pattern.permute.xlu0 0
        %315 = vperm.xlu0 %314, %v244
        %v316 = vpop.permute.xlu0 %315
        %317 = vset.pattern.permute.xlu0 0
        %318 = vperm.xlu0 %317, %v245
        %v319 = vpop.permute.xlu0 %318
        %320 = vset.pattern.permute.xlu0 0
        %321 = vperm.xlu0 %320, %v246
        %v322 = vpop.permute.xlu0 %321
        %323 = vset.pattern.permute.xlu0 0
        %324 = vperm.xlu0 %323, %v247
        %v325 = vpop.permute.xlu0 %324
        %326 = vset.pattern.permute.xlu0 0
        %327 = vperm.xlu0 %326, %v248
        %v328 = vpop.permute.xlu0 %327
        %329 = vset.pattern.permute.xlu0 0
        %330 = vperm.xlu0 %329, %v249
        %v331 = vpop.permute.xlu0 %330
        %332 = vset.pattern.permute.xlu0 0
        %333 = vperm.xlu0 %332, %v250
        %v334 = vpop.permute.xlu0 %333
        %335 = vset.pattern.permute.xlu0 0
        %336 = vperm.xlu0 %335, %v251
        %v337 = vpop.permute.xlu0 %336
        %338 = vset.pattern.permute.xlu0 0
        %339 = vperm.xlu0 %338, %v252
        %v340 = vpop.permute.xlu0 %339
        %341 = vset.pattern.permute.xlu0 0
        %342 = vperm.xlu0 %341, %v253
        %v343 = vpop.permute.xlu0 %342
        %344 = vset.pattern.permute.xlu0 0
        %345 = vperm.xlu0 %344, %v254
        %v346 = vpop.permute.xlu0 %345
        %347 = vset.pattern.permute.xlu0 0
        %348 = vperm.xlu0 %347, %v255
        %v349 = vpop.permute.xlu0 %348
        %350 = vset.pattern.permute.xlu0 0
        %351 = vperm.xlu0 %350, %v256
        %v352 = vpop.permute.xlu0 %351
        %353 = vset.pattern.permute.xlu0 0
        %354 = vperm.xlu0 %353, %v257
        %v355 = vpop.permute.xlu0 %354
        %vm356 = vcmp.eq.s32.totalorder %v262, %v259
        %vm357 = vcmp.eq.s32.totalorder %v265, %v259
        %vm358 = vcmp.eq.s32.totalorder %v268, %v259
        %vm359 = vcmp.eq.s32.totalorder %v271, %v259
        %vm360 = vcmp.eq.s32.totalorder %v274, %v259
        %vm361 = vcmp.eq.s32.totalorder %v277, %v259
        %vm362 = vcmp.eq.s32.totalorder %v280, %v259
        %vm363 = vcmp.eq.s32.totalorder %v283, %v259
        %vm364 = vcmp.eq.s32.totalorder %v286, %v259
        %vm365 = vcmp.eq.s32.totalorder %v289, %v259
        %vm366 = vcmp.eq.s32.totalorder %v292, %v259
        %vm367 = vcmp.eq.s32.totalorder %v295, %v259
        %vm368 = vcmp.eq.s32.totalorder %v298, %v259
        %vm369 = vcmp.eq.s32.totalorder %v301, %v259
        %vm370 = vcmp.eq.s32.totalorder %v304, %v259
        %vm371 = vcmp.eq.s32.totalorder %v307, %v259
        %vm372 = vcmp.eq.s32.totalorder %v310, %v259
        %vm373 = vcmp.eq.s32.totalorder %v313, %v259
        %vm374 = vcmp.eq.s32.totalorder %v316, %v259
        %vm375 = vcmp.eq.s32.totalorder %v319, %v259
        %vm376 = vcmp.eq.s32.totalorder %v322, %v259
        %vm377 = vcmp.eq.s32.totalorder %v325, %v259
        %vm378 = vcmp.eq.s32.totalorder %v328, %v259
        %vm379 = vcmp.eq.s32.totalorder %v331, %v259
        %vm380 = vcmp.eq.s32.totalorder %v334, %v259
        %vm381 = vcmp.eq.s32.totalorder %v337, %v259
        %vm382 = vcmp.eq.s32.totalorder %v340, %v259
        %vm383 = vcmp.eq.s32.totalorder %v343, %v259
        %vm384 = vcmp.eq.s32.totalorder %v346, %v259
        %vm385 = vcmp.eq.s32.totalorder %v349, %v259
        %vm386 = vcmp.eq.s32.totalorder %v352, %v259
        %vm387 = vcmp.eq.s32.totalorder %v355, %v259
        %v388 = vsel %vm356, 1, 0
        %v389 = vsel %vm357, 1, 0
        %v390 = vsel %vm358, 1, 0
        %v391 = vsel %vm359, 1, 0
        %v392 = vsel %vm360, 1, 0
        %v393 = vsel %vm361, 1, 0
        %v394 = vsel %vm362, 1, 0
        %v395 = vsel %vm363, 1, 0
        %v396 = vsel %vm364, 1, 0
        %v397 = vsel %vm365, 1, 0
        %v398 = vsel %vm366, 1, 0
        %v399 = vsel %vm367, 1, 0
        %v400 = vsel %vm368, 1, 0
        %v401 = vsel %vm369, 1, 0
        %v402 = vsel %vm370, 1, 0
        %v403 = vsel %vm371, 1, 0
        %v404 = vsel %vm372, 1, 0
        %v405 = vsel %vm373, 1, 0
        %v406 = vsel %vm374, 1, 0
        %v407 = vsel %vm375, 1, 0
        %v408 = vsel %vm376, 1, 0
        %v409 = vsel %vm377, 1, 0
        %v410 = vsel %vm378, 1, 0
        %v411 = vsel %vm379, 1, 0
        %v412 = vsel %vm380, 1, 0
        %v413 = vsel %vm381, 1, 0
        %v414 = vsel %vm382, 1, 0
        %v415 = vsel %vm383, 1, 0
        %v416 = vsel %vm384, 1, 0
        %v417 = vsel %vm385, 1, 0
        %v418 = vsel %vm386, 1, 0
        %v419 = vsel %vm387, 1, 0
        %v420 = vcvt.s32.f32 %v388
        %v421 = vcvt.s32.f32 %v389
        %v422 = vcvt.s32.f32 %v390
        %v423 = vcvt.s32.f32 %v391
        %v424 = vcvt.s32.f32 %v392
        %v425 = vcvt.s32.f32 %v393
        %v426 = vcvt.s32.f32 %v394
        %v427 = vcvt.s32.f32 %v395
        %v428 = vcvt.s32.f32 %v396
        %v429 = vcvt.s32.f32 %v397
        %v430 = vcvt.s32.f32 %v398
        %v431 = vcvt.s32.f32 %v399
        %v432 = vcvt.s32.f32 %v400
        %v433 = vcvt.s32.f32 %v401
        %v434 = vcvt.s32.f32 %v402
        %v435 = vcvt.s32.f32 %v403
        %v436 = vcvt.s32.f32 %v404
        %v437 = vcvt.s32.f32 %v405
        %v438 = vcvt.s32.f32 %v406
        %v439 = vcvt.s32.f32 %v407
        %v440 = vcvt.s32.f32 %v408
        %v441 = vcvt.s32.f32 %v409
        %v442 = vcvt.s32.f32 %v410
        %v443 = vcvt.s32.f32 %v411
        %v444 = vcvt.s32.f32 %v412
        %v445 = vcvt.s32.f32 %v413
        %v446 = vcvt.s32.f32 %v414
        %v447 = vcvt.s32.f32 %v415
        %v448 = vcvt.s32.f32 %v416
        %v449 = vcvt.s32.f32 %v417
        %v450 = vcvt.s32.f32 %v418
        %v451 = vcvt.s32.f32 %v419
        %v452 = vld [vmem:[%s1] sm:$0xff]
        %v453 = vld [vmem:[%s1 + $0x8] sm:$0xff]
        %v454 = vld [vmem:[%s1 + $0x10] sm:$0xff]
        %v455 = vld [vmem:[%s1 + $0x18] sm:$0xff]
        %v456 = vld [vmem:[%s1 + $0x20] sm:$0xff]
        %v457 = vld [vmem:[%s1 + $0x28] sm:$0xff]
        %v458 = vld [vmem:[%s1 + $0x30] sm:$0xff]
        %v459 = vld [vmem:[%s1 + $0x38] sm:$0xff]
        %v460 = vld [vmem:[%s1 + $0x40] sm:$0xff]
        %v461 = vld [vmem:[%s1 + $0x48] sm:$0xff]
        %v462 = vld [vmem:[%s1 + $0x50] sm:$0xff]
        %v463 = vld [vmem:[%s1 + $0x58] sm:$0xff]
        %v464 = vld [vmem:[%s1 + $0x60] sm:$0xff]
        %v465 = vld [vmem:[%s1 + $0x68] sm:$0xff]
        %v466 = vld [vmem:[%s1 + $0x70] sm:$0xff]
        %v467 = vld [vmem:[%s1 + $0x78] sm:$0xff]
        %468 = vset.pattern.permute.xlu0 1
        %469 = vperm.xlu0 %468, %v226
        %v470 = vpop.permute.xlu0 %469
        %471 = vset.pattern.permute.xlu0 1
        %472 = vperm.xlu0 %471, %v227
        %v473 = vpop.permute.xlu0 %472
        %474 = vset.pattern.permute.xlu0 1
        %475 = vperm.xlu0 %474, %v228
        %v476 = vpop.permute.xlu0 %475
        %477 = vset.pattern.permute.xlu0 1
        %478 = vperm.xlu0 %477, %v229
        %v479 = vpop.permute.xlu0 %478
        %480 = vset.pattern.permute.xlu0 1
        %481 = vperm.xlu0 %480, %v230
        %v482 = vpop.permute.xlu0 %481
        %483 = vset.pattern.permute.xlu0 1
        %484 = vperm.xlu0 %483, %v231
        %v485 = vpop.permute.xlu0 %484
        %486 = vset.pattern.permute.xlu0 1
        %487 = vperm.xlu0 %486, %v232
        %v488 = vpop.permute.xlu0 %487
        %489 = vset.pattern.permute.xlu0 1
        %490 = vperm.xlu0 %489, %v233
        %v491 = vpop.permute.xlu0 %490
        %492 = vset.pattern.permute.xlu0 1
        %493 = vperm.xlu0 %492, %v234
        %v494 = vpop.permute.xlu0 %493
        %495 = vset.pattern.permute.xlu0 1
        %496 = vperm.xlu0 %495, %v235
        %v497 = vpop.permute.xlu0 %496
        %498 = vset.pattern.permute.xlu0 1
        %499 = vperm.xlu0 %498, %v236
        %v500 = vpop.permute.xlu0 %499
        %501 = vset.pattern.permute.xlu0 1
        %502 = vperm.xlu0 %501, %v237
        %v503 = vpop.permute.xlu0 %502
        %504 = vset.pattern.permute.xlu0 1
        %505 = vperm.xlu0 %504, %v238
        %v506 = vpop.permute.xlu0 %505
        %507 = vset.pattern.permute.xlu0 1
        %508 = vperm.xlu0 %507, %v239
        %v509 = vpop.permute.xlu0 %508
        %510 = vset.pattern.permute.xlu0 1
        %511 = vperm.xlu0 %510, %v240
        %v512 = vpop.permute.xlu0 %511
        %513 = vset.pattern.permute.xlu0 1
        %514 = vperm.xlu0 %513, %v241
        %v515 = vpop.permute.xlu0 %514
        %516 = vset.pattern.permute.xlu0 1
        %517 = vperm.xlu0 %516, %v242
        %v518 = vpop.permute.xlu0 %517
        %519 = vset.pattern.permute.xlu0 1
        %520 = vperm.xlu0 %519, %v243
        %v521 = vpop.permute.xlu0 %520
        %522 = vset.pattern.permute.xlu0 1
        %523 = vperm.xlu0 %522, %v244
        %v524 = vpop.permute.xlu0 %523
        %525 = vset.pattern.permute.xlu0 1
        %526 = vperm.xlu0 %525, %v245
        %v527 = vpop.permute.xlu0 %526
        %528 = vset.pattern.permute.xlu0 1
        %529 = vperm.xlu0 %528, %v246
        %v530 = vpop.permute.xlu0 %529
        %531 = vset.pattern.permute.xlu0 1
        %532 = vperm.xlu0 %531, %v247
        %v533 = vpop.permute.xlu0 %532
        %534 = vset.pattern.permute.xlu0 1
        %535 = vperm.xlu0 %534, %v248
        %v536 = vpop.permute.xlu0 %535
        %537 = vset.pattern.permute.xlu0 1
        %538 = vperm.xlu0 %537, %v249
        %v539 = vpop.permute.xlu0 %538
        %540 = vset.pattern.permute.xlu0 1
        %541 = vperm.xlu0 %540, %v250
        %v542 = vpop.permute.xlu0 %541
        %543 = vset.pattern.permute.xlu0 1
        %544 = vperm.xlu0 %543, %v251
        %v545 = vpop.permute.xlu0 %544
        %546 = vset.pattern.permute.xlu0 1
        %547 = vperm.xlu0 %546, %v252
        %v548 = vpop.permute.xlu0 %547
        %549 = vset.pattern.permute.xlu0 1
        %550 = vperm.xlu0 %549, %v253
        %v551 = vpop.permute.xlu0 %550
        %552 = vset.pattern.permute.xlu0 1
        %553 = vperm.xlu0 %552, %v254
        %v554 = vpop.permute.xlu0 %553
        %555 = vset.pattern.permute.xlu0 1
        %556 = vperm.xlu0 %555, %v255
        %v557 = vpop.permute.xlu0 %556
        %558 = vset.pattern.permute.xlu0 1
        %559 = vperm.xlu0 %558, %v256
        %v560 = vpop.permute.xlu0 %559
        %561 = vset.pattern.permute.xlu0 1
        %562 = vperm.xlu0 %561, %v257
        %v563 = vpop.permute.xlu0 %562
        %vm564 = vcmp.eq.s32.totalorder %v470, %v259
        %vm565 = vcmp.eq.s32.totalorder %v473, %v259
        %vm566 = vcmp.eq.s32.totalorder %v476, %v259
        %vm567 = vcmp.eq.s32.totalorder %v479, %v259
        %vm568 = vcmp.eq.s32.totalorder %v482, %v259
        %vm569 = vcmp.eq.s32.totalorder %v485, %v259
        %vm570 = vcmp.eq.s32.totalorder %v488, %v259
        %vm571 = vcmp.eq.s32.totalorder %v491, %v259
        %vm572 = vcmp.eq.s32.totalorder %v494, %v259
        %vm573 = vcmp.eq.s32.totalorder %v497, %v259
        %vm574 = vcmp.eq.s32.totalorder %v500, %v259
        %vm575 = vcmp.eq.s32.totalorder %v503, %v259
        %vm576 = vcmp.eq.s32.totalorder %v506, %v259
        %vm577 = vcmp.eq.s32.totalorder %v509, %v259
        %vm578 = vcmp.eq.s32.totalorder %v512, %v259
        %vm579 = vcmp.eq.s32.totalorder %v515, %v259
        %vm580 = vcmp.eq.s32.totalorder %v518, %v259
        %vm581 = vcmp.eq.s32.totalorder %v521, %v259
        %vm582 = vcmp.eq.s32.totalorder %v524, %v259
        %vm583 = vcmp.eq.s32.totalorder %v527, %v259
        %vm584 = vcmp.eq.s32.totalorder %v530, %v259
        %vm585 = vcmp.eq.s32.totalorder %v533, %v259
        %vm586 = vcmp.eq.s32.totalorder %v536, %v259
        %vm587 = vcmp.eq.s32.totalorder %v539, %v259
        %vm588 = vcmp.eq.s32.totalorder %v542, %v259
        %vm589 = vcmp.eq.s32.totalorder %v545, %v259
        %vm590 = vcmp.eq.s32.totalorder %v548, %v259
        %vm591 = vcmp.eq.s32.totalorder %v551, %v259
        %vm592 = vcmp.eq.s32.totalorder %v554, %v259
        %vm593 = vcmp.eq.s32.totalorder %v557, %v259
        %vm594 = vcmp.eq.s32.totalorder %v560, %v259
        %vm595 = vcmp.eq.s32.totalorder %v563, %v259
        %v596 = vsel %vm564, 1, 0
        %v597 = vsel %vm565, 1, 0
        %v598 = vsel %vm566, 1, 0
        %v599 = vsel %vm567, 1, 0
        %v600 = vsel %vm568, 1, 0
        %v601 = vsel %vm569, 1, 0
        %v602 = vsel %vm570, 1, 0
        %v603 = vsel %vm571, 1, 0
        %v604 = vsel %vm572, 1, 0
        %v605 = vsel %vm573, 1, 0
        %v606 = vsel %vm574, 1, 0
        %v607 = vsel %vm575, 1, 0
        %v608 = vsel %vm576, 1, 0
        %v609 = vsel %vm577, 1, 0
        %v610 = vsel %vm578, 1, 0
        %v611 = vsel %vm579, 1, 0
        %v612 = vsel %vm580, 1, 0
        %v613 = vsel %vm581, 1, 0
        %v614 = vsel %vm582, 1, 0
        %v615 = vsel %vm583, 1, 0
        %v616 = vsel %vm584, 1, 0
        %v617 = vsel %vm585, 1, 0
        %v618 = vsel %vm586, 1, 0
        %v619 = vsel %vm587, 1, 0
        %v620 = vsel %vm588, 1, 0
        %v621 = vsel %vm589, 1, 0
        %v622 = vsel %vm590, 1, 0
        %v623 = vsel %vm591, 1, 0
        %v624 = vsel %vm592, 1, 0
        %v625 = vsel %vm593, 1, 0
        %v626 = vsel %vm594, 1, 0
        %v627 = vsel %vm595, 1, 0
        %v628 = vcvt.s32.f32 %v596
        %v629 = vcvt.s32.f32 %v597
        %v630 = vcvt.s32.f32 %v598
        %v631 = vcvt.s32.f32 %v599
        %v632 = vcvt.s32.f32 %v600
        %v633 = vcvt.s32.f32 %v601
        %v634 = vcvt.s32.f32 %v602
        %v635 = vcvt.s32.f32 %v603
        %v636 = vcvt.s32.f32 %v604
        %v637 = vcvt.s32.f32 %v605
        %v638 = vcvt.s32.f32 %v606
        %v639 = vcvt.s32.f32 %v607
        %v640 = vcvt.s32.f32 %v608
        %v641 = vcvt.s32.f32 %v609
        %v642 = vcvt.s32.f32 %v610
        %v643 = vcvt.s32.f32 %v611
        %v644 = vcvt.s32.f32 %v612
        %v645 = vcvt.s32.f32 %v613
        %v646 = vcvt.s32.f32 %v614
        %v647 = vcvt.s32.f32 %v615
        %v648 = vcvt.s32.f32 %v616
        %v649 = vcvt.s32.f32 %v617
        %v650 = vcvt.s32.f32 %v618
        %v651 = vcvt.s32.f32 %v619
        %v652 = vcvt.s32.f32 %v620
        %v653 = vcvt.s32.f32 %v621
        %v654 = vcvt.s32.f32 %v622
        %v655 = vcvt.s32.f32 %v623
        %v656 = vcvt.s32.f32 %v624
        %v657 = vcvt.s32.f32 %v625
        %v658 = vcvt.s32.f32 %v626
        %v659 = vcvt.s32.f32 %v627
        %v660 = vld [vmem:[%s1 + $0x80] sm:$0xff]
        %v661 = vld [vmem:[%s1 + $0x88] sm:$0xff]
        %v662 = vld [vmem:[%s1 + $0x90] sm:$0xff]
        %v663 = vld [vmem:[%s1 + $0x98] sm:$0xff]
        %v664 = vld [vmem:[%s1 + $0xa0] sm:$0xff]
        %v665 = vld [vmem:[%s1 + $0xa8] sm:$0xff]
        %v666 = vld [vmem:[%s1 + $0xb0] sm:$0xff]
        %v667 = vld [vmem:[%s1 + $0xb8] sm:$0xff]
        %v668 = vld [vmem:[%s1 + $0xc0] sm:$0xff]
        %v669 = vld [vmem:[%s1 + $0xc8] sm:$0xff]
        %v670 = vld [vmem:[%s1 + $0xd0] sm:$0xff]
        %v671 = vld [vmem:[%s1 + $0xd8] sm:$0xff]
        %v672 = vld [vmem:[%s1 + $0xe0] sm:$0xff]
        %v673 = vld [vmem:[%s1 + $0xe8] sm:$0xff]
        %v674 = vld [vmem:[%s1 + $0xf0] sm:$0xff]
        %v675 = vld [vmem:[%s1 + $0xf8] sm:$0xff]
        %676 = vmatpush.msra.mxu0 %v675
        %677 = vmatpush.msra.mxu0 %v674
        %678 = vmatpush.msra.mxu0 %v673
        %679 = vmatpush.msra.mxu0 %v672
        %680 = vmatpush.msra.mxu0 %v671
        %681 = vmatpush.msra.mxu0 %v670
        %682 = vmatpush.msra.mxu0 %v669
        %683 = vmatpush.msra.mxu0 %v668
        %684 = vmatpush.msra.mxu0 %v667
        %685 = vmatpush.msra.mxu0 %v666
        %686 = vmatpush.msra.mxu0 %v665
        %687 = vmatpush.msra.mxu0 %v664
        %688 = vmatpush.msra.mxu0 %v663
        %689 = vmatpush.msra.mxu0 %v662
        %690 = vmatpush.msra.mxu0 %v661
        %691 = vmatpush.msra.mxu0 %v660
        %692 = vmatmul.f32.gmra.mxu0 %v628
        %v693 = vpop.f32.mrf.mxu0
        %v694 = vadd.f32 0.0, %v693
        %695 = vmatmul.f32.gmra.mxu0 %v629
        %v696 = vpop.f32.mrf.mxu0
        %v697 = vadd.f32 0.0, %v696
        %698 = vmatmul.f32.gmra.mxu0 %v630
        %v699 = vpop.f32.mrf.mxu0
        %v700 = vadd.f32 0.0, %v699
        %701 = vmatmul.f32.gmra.mxu0 %v631
        %v702 = vpop.f32.mrf.mxu0
        %v703 = vadd.f32 0.0, %v702
        %704 = vmatmul.f32.gmra.mxu0 %v632
        %v705 = vpop.f32.mrf.mxu0
        %v706 = vadd.f32 0.0, %v705
        %707 = vmatmul.f32.gmra.mxu0 %v633
        %v708 = vpop.f32.mrf.mxu0
        %v709 = vadd.f32 0.0, %v708
        %710 = vmatmul.f32.gmra.mxu0 %v634
        %v711 = vpop.f32.mrf.mxu0
        %v712 = vadd.f32 0.0, %v711
        %713 = vmatmul.f32.gmra.mxu0 %v635
        %v714 = vpop.f32.mrf.mxu0
        %v715 = vadd.f32 0.0, %v714
        %716 = vmatmul.f32.gmra.mxu0 %v636
        %v717 = vpop.f32.mrf.mxu0
        %v718 = vadd.f32 0.0, %v717
        %719 = vmatmul.f32.gmra.mxu0 %v637
        %v720 = vpop.f32.mrf.mxu0
        %v721 = vadd.f32 0.0, %v720
        %722 = vmatmul.f32.gmra.mxu0 %v638
        %v723 = vpop.f32.mrf.mxu0
        %v724 = vadd.f32 0.0, %v723
        %725 = vmatmul.f32.gmra.mxu0 %v639
        %v726 = vpop.f32.mrf.mxu0
        %v727 = vadd.f32 0.0, %v726
        %728 = vmatmul.f32.gmra.mxu0 %v640
        %v729 = vpop.f32.mrf.mxu0
        %v730 = vadd.f32 0.0, %v729
        %731 = vmatmul.f32.gmra.mxu0 %v641
        %v732 = vpop.f32.mrf.mxu0
        %v733 = vadd.f32 0.0, %v732
        %734 = vmatmul.f32.gmra.mxu0 %v642
        %v735 = vpop.f32.mrf.mxu0
        %v736 = vadd.f32 0.0, %v735
        %737 = vmatmul.f32.gmra.mxu0 %v643
        %v738 = vpop.f32.mrf.mxu0
        %v739 = vadd.f32 0.0, %v738
        %740 = vmatmul.f32.gmra.mxu0 %v644
        %v741 = vpop.f32.mrf.mxu0
        %v742 = vadd.f32 0.0, %v741
        %743 = vmatmul.f32.gmra.mxu0 %v645
        %v744 = vpop.f32.mrf.mxu0
        %v745 = vadd.f32 0.0, %v744
        %746 = vmatmul.f32.gmra.mxu0 %v646
        %v747 = vpop.f32.mrf.mxu0
        %v748 = vadd.f32 0.0, %v747
        %749 = vmatmul.f32.gmra.mxu0 %v647
        %v750 = vpop.f32.mrf.mxu0
        %v751 = vadd.f32 0.0, %v750
        %752 = vmatmul.f32.gmra.mxu0 %v648
        %v753 = vpop.f32.mrf.mxu0
        %v754 = vadd.f32 0.0, %v753
        %755 = vmatmul.f32.gmra.mxu0 %v649
        %v756 = vpop.f32.mrf.mxu0
        %v757 = vadd.f32 0.0, %v756
        %758 = vmatmul.f32.gmra.mxu0 %v650
        %v759 = vpop.f32.mrf.mxu0
        %v760 = vadd.f32 0.0, %v759
        %761 = vmatmul.f32.gmra.mxu0 %v651
        %v762 = vpop.f32.mrf.mxu0
        %v763 = vadd.f32 0.0, %v762
        %764 = vmatmul.f32.gmra.mxu0 %v652
        %v765 = vpop.f32.mrf.mxu0
        %v766 = vadd.f32 0.0, %v765
        %767 = vmatmul.f32.gmra.mxu0 %v653
        %v768 = vpop.f32.mrf.mxu0
        %v769 = vadd.f32 0.0, %v768
        %770 = vmatmul.f32.gmra.mxu0 %v654
        %v771 = vpop.f32.mrf.mxu0
        %v772 = vadd.f32 0.0, %v771
        %773 = vmatmul.f32.gmra.mxu0 %v655
        %v774 = vpop.f32.mrf.mxu0
        %v775 = vadd.f32 0.0, %v774
        %776 = vmatmul.f32.gmra.mxu0 %v656
        %v777 = vpop.f32.mrf.mxu0
        %v778 = vadd.f32 0.0, %v777
        %779 = vmatmul.f32.gmra.mxu0 %v657
        %v780 = vpop.f32.mrf.mxu0
        %v781 = vadd.f32 0.0, %v780
        %782 = vmatmul.f32.gmra.mxu0 %v658
        %v783 = vpop.f32.mrf.mxu0
        %v784 = vadd.f32 0.0, %v783
        %785 = vmatmul.f32.gmra.mxu0 %v659
        %v786 = vpop.f32.mrf.mxu0
        %v787 = vadd.f32 0.0, %v786
        %788 = vdwg.mxu0
        %789 = vmatpush.msra.mxu0 %v467
        %790 = vmatpush.msra.mxu0 %v466
        %791 = vmatpush.msra.mxu0 %v465
        %792 = vmatpush.msra.mxu0 %v464
        %793 = vmatpush.msra.mxu0 %v463
        %794 = vmatpush.msra.mxu0 %v462
        %795 = vmatpush.msra.mxu0 %v461
        %796 = vmatpush.msra.mxu0 %v460
        %797 = vmatpush.msra.mxu0 %v459
        %798 = vmatpush.msra.mxu0 %v458
        %799 = vmatpush.msra.mxu0 %v457
        %800 = vmatpush.msra.mxu0 %v456
        %801 = vmatpush.msra.mxu0 %v455
        %802 = vmatpush.msra.mxu0 %v454
        %803 = vmatpush.msra.mxu0 %v453
        %804 = vmatpush.msra.mxu0 %v452
        %805 = vmatmul.f32.gmra.mxu0 %v420
        %v806 = vpop.f32.mrf.mxu0
        %v807 = vadd.f32 %v694, %v806
        %808 = vmatmul.f32.gmra.mxu0 %v421
        %v809 = vpop.f32.mrf.mxu0
        %v810 = vadd.f32 %v697, %v809
        %811 = vmatmul.f32.gmra.mxu0 %v422
        %v812 = vpop.f32.mrf.mxu0
        %v813 = vadd.f32 %v700, %v812
        %814 = vmatmul.f32.gmra.mxu0 %v423
        %v815 = vpop.f32.mrf.mxu0
        %v816 = vadd.f32 %v703, %v815
        %817 = vmatmul.f32.gmra.mxu0 %v424
        %v818 = vpop.f32.mrf.mxu0
        %v819 = vadd.f32 %v706, %v818
        %820 = vmatmul.f32.gmra.mxu0 %v425
        %v821 = vpop.f32.mrf.mxu0
        %v822 = vadd.f32 %v709, %v821
        %823 = vmatmul.f32.gmra.mxu0 %v426
        %v824 = vpop.f32.mrf.mxu0
        %v825 = vadd.f32 %v712, %v824
        %826 = vmatmul.f32.gmra.mxu0 %v427
        %v827 = vpop.f32.mrf.mxu0
        %v828 = vadd.f32 %v715, %v827
        %829 = vmatmul.f32.gmra.mxu0 %v428
        %v830 = vpop.f32.mrf.mxu0
        %v831 = vadd.f32 %v718, %v830
        %832 = vmatmul.f32.gmra.mxu0 %v429
        %v833 = vpop.f32.mrf.mxu0
        %v834 = vadd.f32 %v721, %v833
        %835 = vmatmul.f32.gmra.mxu0 %v430
        %v836 = vpop.f32.mrf.mxu0
        %v837 = vadd.f32 %v724, %v836
        %838 = vmatmul.f32.gmra.mxu0 %v431
        %v839 = vpop.f32.mrf.mxu0
        %v840 = vadd.f32 %v727, %v839
        %841 = vmatmul.f32.gmra.mxu0 %v432
        %v842 = vpop.f32.mrf.mxu0
        %v843 = vadd.f32 %v730, %v842
        %844 = vmatmul.f32.gmra.mxu0 %v433
        %v845 = vpop.f32.mrf.mxu0
        %v846 = vadd.f32 %v733, %v845
        %847 = vmatmul.f32.gmra.mxu0 %v434
        %v848 = vpop.f32.mrf.mxu0
        %v849 = vadd.f32 %v736, %v848
        %850 = vmatmul.f32.gmra.mxu0 %v435
        %v851 = vpop.f32.mrf.mxu0
        %v852 = vadd.f32 %v739, %v851
        %853 = vmatmul.f32.gmra.mxu0 %v436
        %v854 = vpop.f32.mrf.mxu0
        %v855 = vadd.f32 %v742, %v854
        %856 = vmatmul.f32.gmra.mxu0 %v437
        %v857 = vpop.f32.mrf.mxu0
        %v858 = vadd.f32 %v745, %v857
        %859 = vmatmul.f32.gmra.mxu0 %v438
        %v860 = vpop.f32.mrf.mxu0
        %v861 = vadd.f32 %v748, %v860
        %862 = vmatmul.f32.gmra.mxu0 %v439
        %v863 = vpop.f32.mrf.mxu0
        %v864 = vadd.f32 %v751, %v863
        %865 = vmatmul.f32.gmra.mxu0 %v440
        %v866 = vpop.f32.mrf.mxu0
        %v867 = vadd.f32 %v754, %v866
        %868 = vmatmul.f32.gmra.mxu0 %v441
        %v869 = vpop.f32.mrf.mxu0
        %v870 = vadd.f32 %v757, %v869
        %871 = vmatmul.f32.gmra.mxu0 %v442
        %v872 = vpop.f32.mrf.mxu0
        %v873 = vadd.f32 %v760, %v872
        %874 = vmatmul.f32.gmra.mxu0 %v443
        %v875 = vpop.f32.mrf.mxu0
        %v876 = vadd.f32 %v763, %v875
        %877 = vmatmul.f32.gmra.mxu0 %v444
        %v878 = vpop.f32.mrf.mxu0
        %v879 = vadd.f32 %v766, %v878
        %880 = vmatmul.f32.gmra.mxu0 %v445
        %v881 = vpop.f32.mrf.mxu0
        %v882 = vadd.f32 %v769, %v881
        %883 = vmatmul.f32.gmra.mxu0 %v446
        %v884 = vpop.f32.mrf.mxu0
        %v885 = vadd.f32 %v772, %v884
        %886 = vmatmul.f32.gmra.mxu0 %v447
        %v887 = vpop.f32.mrf.mxu0
        %v888 = vadd.f32 %v775, %v887
        %889 = vmatmul.f32.gmra.mxu0 %v448
        %v890 = vpop.f32.mrf.mxu0
        %v891 = vadd.f32 %v778, %v890
        %892 = vmatmul.f32.gmra.mxu0 %v449
        %v893 = vpop.f32.mrf.mxu0
        %v894 = vadd.f32 %v781, %v893
        %895 = vmatmul.f32.gmra.mxu0 %v450
        %v896 = vpop.f32.mrf.mxu0
        %v897 = vadd.f32 %v784, %v896
        %898 = vmatmul.f32.gmra.mxu0 %v451
        %v899 = vpop.f32.mrf.mxu0
        %v900 = vadd.f32 %v787, %v899
        %901 = vdwg.mxu0
        %v902 = vld [vmem:[%s2] sm:$0x1]
        %v904 = vperm.slane %v902, 0
        %v906 = vadd.f32 %v807, %v904
        %v907 = vadd.f32 %v810, %v904
        %v908 = vadd.f32 %v813, %v904
        %v909 = vadd.f32 %v816, %v904
        %v910 = vadd.f32 %v819, %v904
        %v911 = vadd.f32 %v822, %v904
        %v912 = vadd.f32 %v825, %v904
        %v913 = vadd.f32 %v828, %v904
        %v914 = vadd.f32 %v831, %v904
        %v915 = vadd.f32 %v834, %v904
        %v916 = vadd.f32 %v837, %v904
        %v917 = vadd.f32 %v840, %v904
        %v918 = vadd.f32 %v843, %v904
        %v919 = vadd.f32 %v846, %v904
        %v920 = vadd.f32 %v849, %v904
        %v921 = vadd.f32 %v852, %v904
        %v922 = vadd.f32 %v855, %v904
        %v923 = vadd.f32 %v858, %v904
        %v924 = vadd.f32 %v861, %v904
        %v925 = vadd.f32 %v864, %v904
        %v926 = vadd.f32 %v867, %v904
        %v927 = vadd.f32 %v870, %v904
        %v928 = vadd.f32 %v873, %v904
        %v929 = vadd.f32 %v876, %v904
        %v930 = vadd.f32 %v879, %v904
        %v931 = vadd.f32 %v882, %v904
        %v932 = vadd.f32 %v885, %v904
        %v933 = vadd.f32 %v888, %v904
        %v934 = vadd.f32 %v891, %v904
        %v935 = vadd.f32 %v894, %v904
        %v936 = vadd.f32 %v897, %v904
        %v937 = vadd.f32 %v900, %v904
        %v938 = vmax.f32 %v906, 0.0
        %v939 = vmax.f32 %v907, 0.0
        %v940 = vmax.f32 %v908, 0.0
        %v941 = vmax.f32 %v909, 0.0
        %v942 = vmax.f32 %v910, 0.0
        %v943 = vmax.f32 %v911, 0.0
        %v944 = vmax.f32 %v912, 0.0
        %v945 = vmax.f32 %v913, 0.0
        %v946 = vmax.f32 %v914, 0.0
        %v947 = vmax.f32 %v915, 0.0
        %v948 = vmax.f32 %v916, 0.0
        %v949 = vmax.f32 %v917, 0.0
        %v950 = vmax.f32 %v918, 0.0
        %v951 = vmax.f32 %v919, 0.0
        %v952 = vmax.f32 %v920, 0.0
        %v953 = vmax.f32 %v921, 0.0
        %v954 = vmax.f32 %v922, 0.0
        %v955 = vmax.f32 %v923, 0.0
        %v956 = vmax.f32 %v924, 0.0
        %v957 = vmax.f32 %v925, 0.0
        %v958 = vmax.f32 %v926, 0.0
        %v959 = vmax.f32 %v927, 0.0
        %v960 = vmax.f32 %v928, 0.0
        %v961 = vmax.f32 %v929, 0.0
        %v962 = vmax.f32 %v930, 0.0
        %v963 = vmax.f32 %v931, 0.0
        %v964 = vmax.f32 %v932, 0.0
        %v965 = vmax.f32 %v933, 0.0
        %v966 = vmax.f32 %v934, 0.0
        %v967 = vmax.f32 %v935, 0.0
        %v968 = vmax.f32 %v936, 0.0
        %v969 = vmax.f32 %v937, 0.0
        %v970 = vld [vmem:[%s3] sm:$0xff]
        %v971 = vld [vmem:[%s3 + $0x8] sm:$0xff]
        %v972 = vld [vmem:[%s3 + $0x10] sm:$0xff]
        %v973 = vld [vmem:[%s3 + $0x18] sm:$0xff]
        %v974 = vld [vmem:[%s3 + $0x20] sm:$0xff]
        %v975 = vld [vmem:[%s3 + $0x28] sm:$0xff]
        %v976 = vld [vmem:[%s3 + $0x30] sm:$0xff]
        %v977 = vld [vmem:[%s3 + $0x38] sm:$0xff]
        %v978 = vld [vmem:[%s3 + $0x40] sm:$0xff]
        %v979 = vld [vmem:[%s3 + $0x48] sm:$0xff]
        %v980 = vld [vmem:[%s3 + $0x50] sm:$0xff]
        %v981 = vld [vmem:[%s3 + $0x58] sm:$0xff]
        %v982 = vld [vmem:[%s3 + $0x60] sm:$0xff]
        %v983 = vld [vmem:[%s3 + $0x68] sm:$0xff]
        %v984 = vld [vmem:[%s3 + $0x70] sm:$0xff]
        %v985 = vld [vmem:[%s3 + $0x78] sm:$0xff]
        %v986 = vld [vmem:[%s4] sm:$0x1]
        %v988 = vperm.slane %v986, 0
        %990 = vmatpush.msra.mxu0 %v985
        %991 = vmatpush.msra.mxu0 %v984
        %992 = vmatpush.msra.mxu0 %v983
        %993 = vmatpush.msra.mxu0 %v982
        %994 = vmatpush.msra.mxu0 %v981
        %995 = vmatpush.msra.mxu0 %v980
        %996 = vmatpush.msra.mxu0 %v979
        %997 = vmatpush.msra.mxu0 %v978
        %998 = vmatpush.msra.mxu0 %v977
        %999 = vmatpush.msra.mxu0 %v976
        %1000 = vmatpush.msra.mxu0 %v975
        %1001 = vmatpush.msra.mxu0 %v974
        %1002 = vmatpush.msra.mxu0 %v973
        %1003 = vmatpush.msra.mxu0 %v972
        %1004 = vmatpush.msra.mxu0 %v971
        %1005 = vmatpush.msra.mxu0 %v970
        %1006 = vmatmul.f32.gmra.mxu0 %v938
        %v1007 = vpop.f32.mrf.mxu0
        %v1008 = vadd.f32 %v988, %v1007
        %1009 = vmatmul.f32.gmra.mxu0 %v939
        %v1010 = vpop.f32.mrf.mxu0
        %v1011 = vadd.f32 %v988, %v1010
        %1012 = vmatmul.f32.gmra.mxu0 %v940
        %v1013 = vpop.f32.mrf.mxu0
        %v1014 = vadd.f32 %v988, %v1013
        %1015 = vmatmul.f32.gmra.mxu0 %v941
        %v1016 = vpop.f32.mrf.mxu0
        %v1017 = vadd.f32 %v988, %v1016
        %1018 = vmatmul.f32.gmra.mxu0 %v942
        %v1019 = vpop.f32.mrf.mxu0
        %v1020 = vadd.f32 %v988, %v1019
        %1021 = vmatmul.f32.gmra.mxu0 %v943
        %v1022 = vpop.f32.mrf.mxu0
        %v1023 = vadd.f32 %v988, %v1022
        %1024 = vmatmul.f32.gmra.mxu0 %v944
        %v1025 = vpop.f32.mrf.mxu0
        %v1026 = vadd.f32 %v988, %v1025
        %1027 = vmatmul.f32.gmra.mxu0 %v945
        %v1028 = vpop.f32.mrf.mxu0
        %v1029 = vadd.f32 %v988, %v1028
        %1030 = vmatmul.f32.gmra.mxu0 %v946
        %v1031 = vpop.f32.mrf.mxu0
        %v1032 = vadd.f32 %v988, %v1031
        %1033 = vmatmul.f32.gmra.mxu0 %v947
        %v1034 = vpop.f32.mrf.mxu0
        %v1035 = vadd.f32 %v988, %v1034
        %1036 = vmatmul.f32.gmra.mxu0 %v948
        %v1037 = vpop.f32.mrf.mxu0
        %v1038 = vadd.f32 %v988, %v1037
        %1039 = vmatmul.f32.gmra.mxu0 %v949
        %v1040 = vpop.f32.mrf.mxu0
        %v1041 = vadd.f32 %v988, %v1040
        %1042 = vmatmul.f32.gmra.mxu0 %v950
        %v1043 = vpop.f32.mrf.mxu0
        %v1044 = vadd.f32 %v988, %v1043
        %1045 = vmatmul.f32.gmra.mxu0 %v951
        %v1046 = vpop.f32.mrf.mxu0
        %v1047 = vadd.f32 %v988, %v1046
        %1048 = vmatmul.f32.gmra.mxu0 %v952
        %v1049 = vpop.f32.mrf.mxu0
        %v1050 = vadd.f32 %v988, %v1049
        %1051 = vmatmul.f32.gmra.mxu0 %v953
        %v1052 = vpop.f32.mrf.mxu0
        %v1053 = vadd.f32 %v988, %v1052
        %1054 = vmatmul.f32.gmra.mxu0 %v954
        %v1055 = vpop.f32.mrf.mxu0
        %v1056 = vadd.f32 %v988, %v1055
        %1057 = vmatmul.f32.gmra.mxu0 %v955
        %v1058 = vpop.f32.mrf.mxu0
        %v1059 = vadd.f32 %v988, %v1058
        %1060 = vmatmul.f32.gmra.mxu0 %v956
        %v1061 = vpop.f32.mrf.mxu0
        %v1062 = vadd.f32 %v988, %v1061
        %1063 = vmatmul.f32.gmra.mxu0 %v957
        %v1064 = vpop.f32.mrf.mxu0
        %v1065 = vadd.f32 %v988, %v1064
        %1066 = vmatmul.f32.gmra.mxu0 %v958
        %v1067 = vpop.f32.mrf.mxu0
        %v1068 = vadd.f32 %v988, %v1067
        %1069 = vmatmul.f32.gmra.mxu0 %v959
        %v1070 = vpop.f32.mrf.mxu0
        %v1071 = vadd.f32 %v988, %v1070
        %1072 = vmatmul.f32.gmra.mxu0 %v960
        %v1073 = vpop.f32.mrf.mxu0
        %v1074 = vadd.f32 %v988, %v1073
        %1075 = vmatmul.f32.gmra.mxu0 %v961
        %v1076 = vpop.f32.mrf.mxu0
        %v1077 = vadd.f32 %v988, %v1076
        %1078 = vmatmul.f32.gmra.mxu0 %v962
        %v1079 = vpop.f32.mrf.mxu0
        %v1080 = vadd.f32 %v988, %v1079
        %1081 = vmatmul.f32.gmra.mxu0 %v963
        %v1082 = vpop.f32.mrf.mxu0
        %v1083 = vadd.f32 %v988, %v1082
        %1084 = vmatmul.f32.gmra.mxu0 %v964
        %v1085 = vpop.f32.mrf.mxu0
        %v1086 = vadd.f32 %v988, %v1085
        %1087 = vmatmul.f32.gmra.mxu0 %v965
        %v1088 = vpop.f32.mrf.mxu0
        %v1089 = vadd.f32 %v988, %v1088
        %1090 = vmatmul.f32.gmra.mxu0 %v966
        %v1091 = vpop.f32.mrf.mxu0
        %v1092 = vadd.f32 %v988, %v1091
        %1093 = vmatmul.f32.gmra.mxu0 %v967
        %v1094 = vpop.f32.mrf.mxu0
        %v1095 = vadd.f32 %v988, %v1094
        %1096 = vmatmul.f32.gmra.mxu0 %v968
        %v1097 = vpop.f32.mrf.mxu0
        %v1098 = vadd.f32 %v988, %v1097
        %1099 = vmatmul.f32.gmra.mxu0 %v969
        %v1100 = vpop.f32.mrf.mxu0
        %v1101 = vadd.f32 %v988, %v1100
        %1102 = vdwg.mxu0
        %1103 = vst [vmem:[%s218] sm:$0xff] %v1008
        %1104 = vst [vmem:[%s218 + $0x8] sm:$0xff] %v1011
        %1105 = vst [vmem:[%s218 + $0x10] sm:$0xff] %v1014
        %1106 = vst [vmem:[%s218 + $0x18] sm:$0xff] %v1017
        %1107 = vst [vmem:[%s218 + $0x20] sm:$0xff] %v1020
        %1108 = vst [vmem:[%s218 + $0x28] sm:$0xff] %v1023
        %1109 = vst [vmem:[%s218 + $0x30] sm:$0xff] %v1026
        %1110 = vst [vmem:[%s218 + $0x38] sm:$0xff] %v1029
        %1111 = vst [vmem:[%s218 + $0x40] sm:$0xff] %v1032
        %1112 = vst [vmem:[%s218 + $0x48] sm:$0xff] %v1035
        %1113 = vst [vmem:[%s218 + $0x50] sm:$0xff] %v1038
        %1114 = vst [vmem:[%s218 + $0x58] sm:$0xff] %v1041
        %1115 = vst [vmem:[%s218 + $0x60] sm:$0xff] %v1044
        %1116 = vst [vmem:[%s218 + $0x68] sm:$0xff] %v1047
        %1117 = vst [vmem:[%s218 + $0x70] sm:$0xff] %v1050
        %1118 = vst [vmem:[%s218 + $0x78] sm:$0xff] %v1053
        %1119 = vst [vmem:[%s218 + $0x80] sm:$0xff] %v1056
        %1120 = vst [vmem:[%s218 + $0x88] sm:$0xff] %v1059
        %1121 = vst [vmem:[%s218 + $0x90] sm:$0xff] %v1062
        %1122 = vst [vmem:[%s218 + $0x98] sm:$0xff] %v1065
        %1123 = vst [vmem:[%s218 + $0xa0] sm:$0xff] %v1068
        %1124 = vst [vmem:[%s218 + $0xa8] sm:$0xff] %v1071
        %1125 = vst [vmem:[%s218 + $0xb0] sm:$0xff] %v1074
        %1126 = vst [vmem:[%s218 + $0xb8] sm:$0xff] %v1077
        %1127 = vst [vmem:[%s218 + $0xc0] sm:$0xff] %v1080
        %1128 = vst [vmem:[%s218 + $0xc8] sm:$0xff] %v1083
        %1129 = vst [vmem:[%s218 + $0xd0] sm:$0xff] %v1086
        %1130 = vst [vmem:[%s218 + $0xd8] sm:$0xff] %v1089
        %1131 = vst [vmem:[%s218 + $0xe0] sm:$0xff] %v1092
        %1132 = vst [vmem:[%s218 + $0xe8] sm:$0xff] %v1095
        %1133 = vst [vmem:[%s218 + $0xf0] sm:$0xff] %v1098
        %1134 = vst [vmem:[%s218 + $0xf8] sm:$0xff] %v1101
        %s1135 = sand.u32 %s137, 1
        %s1136 = scalar_lea.sflag [#allocation3], %s1135
        %s1137 = sand.u32 %s137, 1
        %s1138 = smul.addr %s1137, 256
        %s1139 = scalar_lea.vmem [#allocation2], %s1138
        // Predicated region
        $region41: #{ngram_forward.1} parent=39 // pred_check
          %p1140 = pneg %p147
        $region42: #{ngram_forward.1} parent=39 // pred_check_branch
          %1142 = sbr.rel (%p1140) target = $region44
        $region43: #{ngram_forward.1} parent=39 // pred_region
          %s1143 = smul.u32 32, %s19
          %1145 = vsyncadd %s1136, 0
          %s1146 = smul.addr %s1143, 8
          %s1147 = scalar_lea.hbm %s5, %s1146
          %s1148 = sshll.u32 %s1139, 4
          %s1149 = int_to_ptr.vmem [resolvable:$true] %s1148
          %s1150 = sshll.u32 %s1147, 4
          %s1151 = int_to_ptr.hbm [resolvable:$true] %s1150
          %1156 = dma.vmem_to_hbm [thread:$0]  %s1149, 4096, %s1151, %s1136, 128, 128, 8
        $region44: #{ngram_forward.1} parent=39 // pred_fallthru
          _
      $region40: #{ngram_forward.1} parent=5 // pred_fallthru
        _
      %p1157 = scmp.le.s32.totalorder 2, %s14
      // Predicated region
      $region45: #{ngram_forward.1} parent=5 // pred_check
        %p1158 = pneg %p1157
      $region46: #{ngram_forward.1} parent=5 // pred_check_branch
        %1160 = sbr.rel (%p1158) target = $region48
      $region47: #{ngram_forward.1} parent=5 // pred_region
        %s1161 = ssub.s32 %s14, 2
        // Predicated region
        $region49: #{ngram_forward.1} parent=47 // pred_check
          %p1162 = pneg %p153
        $region50: #{ngram_forward.1} parent=47 // pred_check_branch
          %1164 = sbr.rel (%p1162) target = $region52
        $region51: #{ngram_forward.1} parent=47 // pred_region
          %s1165 = sand.u32 %s138, 1
          %s1166 = scalar_lea.sflag [#allocation3], %s1165
          %s1167 = sand.u32 %s138, 1
          %s1168 = smul.addr %s1167, 256
          %s1169 = scalar_lea.vmem [#allocation2], %s1168
          %1171 = dma.done %s1166, 4096
        $region52: #{ngram_forward.1} parent=47 // pred_fallthru
          _
      $region48: #{ngram_forward.1} parent=5 // pred_fallthru
        _
    $region6: #{ngram_forward.1} parent=1 // loop_footer
      %s18 = sadd.s32 1, %s14
    $region7: #{ngram_forward.1} parent=1 // loop_footer_branch
      %13 = sbr.rel target = $region3
    $region8: #{ngram_forward.1} parent=1 // loop_exit
      _
    %1172 = vsyncpa [#allocation3], 1
    %s1173 = scalar_lea.sflag [#allocation3], 1
    %1174 = vsyncpa %s1173, 1

</llo_original>
